<compile_context>
chip_gen: v7x
topology: tpu7x:2x2x1
jax: 0.10.0
libtpu: 0.0.40
codegen_flags: <defaults>
</compile_context>

<pallas_src>
import functools

import jax
import jax.numpy as jnp
from jax.experimental import pallas as pl
from jax.experimental.pallas import tpu as pltpu


def _round_up(v, m):
    return (v + m - 1) // m * m


def _default_basis_dtype():
    """bf16 elementwise basis on v6e/v7x (bf16 VPU/EUP); f32 on older gens."""
    try:
        kind = jax.devices()[0].device_kind.lower()
    except Exception:  # pragma: no cover - conservative fallback
        return jnp.float32
    if any(tag in kind for tag in ("v2", "v3", "v4", "v5")):
        return jnp.float32
    return jnp.bfloat16


def _rbf_linear_kernel(sgrid_ref, x_ref, w_ref, o_ref, *, num_grids, inv_alpha):
    """One batch tile (gaussian_rbf).

    sgrid_ref : (1, G*IN)    basis dtype; sgrid[0, g*IN+i] = grid[g] / alpha
    x_ref     : (TB, IN)     input tile
    w_ref     : (G*IN, OUT)  bf16 g-major flattened spline weight
    o_ref     : (TB, OUT)    output tile
    """
    bdt = sgrid_ref.dtype
    xs = x_ref[...].astype(bdt) * inv_alpha                   # (TB, IN), scale hoisted
    # g-major lane-dense replication: column g*IN + i holds x[:, i] / alpha.
    xt = jnp.concatenate([xs] * num_grids, axis=-1)           # (TB, G*IN)
    d = xt - sgrid_ref[...]                                   # broadcast (1, G*IN)
    basis = jnp.exp(-(d * d))                                 # single lane-dense EUP pass
    lhs = basis if basis.dtype == w_ref.dtype else basis.astype(w_ref.dtype)
    acc = jnp.dot(lhs, w_ref[...], preferred_element_type=jnp.float32)
    o_ref[...] = acc.astype(o_ref.dtype)


def prepare_rbf_linear_params(grid, spline_weight, *, in_features, out_features,
                              num_grids, grid_min=-2.0, grid_max=2.0,
                              basis_dtype=None):
    """Hoisted per-weight-update preprocessing (do NOT run per forward call)."""
    if basis_dtype is None:
        basis_dtype = _default_basis_dtype()
    alpha = (grid_max - grid_min) / (num_grids - 1)
    inv_alpha = 1.0 / alpha
    # spline_weight flat row index is i*G + g  ->  g-major (G*IN, OUT) so it
    # lines up with the g-major in-kernel basis slab. Cast once to bf16
    # (MXU-native on v5e/v6e/v7x).
    w_gmaj = (
        spline_weight.reshape(in_features, num_grids, out_features)
        .transpose(1, 0, 2)
        .reshape(num_grids * in_features, out_features)
        .astype(jnp.bfloat16)
    )
    # Pre-scaled grid row: sgrid[0, g*IN + i] = grid[g] / alpha.
    sgrid = (
        jnp.repeat(grid.astype(jnp.float32) * inv_alpha, in_features)[None, :]
        .astype(basis_dtype)
    )
    return sgrid, w_gmaj


def rbf_linear_forward(x, sgrid, w_gmaj, *, num_grids, grid_min=-2.0, grid_max=2.0,
                       block_batch=1024, out_dtype=None):
    """Pallas forward for RBFLinear (gaussian_rbf) using prepared params."""
    assert num_grids > 1, "num_grids must be > 1 (alpha = (max-min)/(num_grids-1))"
    assert block_batch % 8 == 0
    in_features = x.shape[-1]
    gk, out_features = w_gmaj.shape
    assert gk == num_grids * in_features
    assert sgrid.shape == (1, gk)
    alpha = (grid_max - grid_min) / (num_grids - 1)
    inv_alpha = 1.0 / alpha
    if out_dtype is None:
        out_dtype = x.dtype   # pass jnp.bfloat16 here to halve output HBM traffic

    # Flatten arbitrary leading dims (matches basis.view(*x.shape[:-2], -1)).
    lead = x.shape[:-1]
    xf = x.reshape(-1, in_features)
    b = xf.shape[0]

    # Batch tile: as large as requested (amortize per-grid-step overhead), but
    # capped so the batch grid has >= 2 tiles (both v7x TensorCores get work).
    # Ragged tail tile handled by the grid (no jnp.pad / extra HBM copy of x).
    tb = min(block_batch, _round_up(max(pl.cdiv(b, 2), 1), 8))
    n_tiles = pl.cdiv(b, tb)

    kernel = functools.partial(
        _rbf_linear_kernel, num_grids=num_grids, inv_alpha=inv_alpha
    )

    out = pl.pallas_call(
        kernel,
        out_shape=jax.ShapeDtypeStruct((b, out_features), out_dtype),
        grid=(n_tiles,),
        in_specs=[
            pl.BlockSpec((1, gk), lambda i: (0, 0)),
            pl.BlockSpec((tb, in_features), lambda i: (i, 0)),
            # Invariant weight block (constant index_map -> DMA'd only once).
            pl.BlockSpec((gk, out_features), lambda i: (0, 0)),
        ],
        # Exact-width output block: no padded columns written to HBM, no
        # post-call slice/copy.
        out_specs=pl.BlockSpec((tb, out_features), lambda i: (i, 0)),
        compiler_params=pltpu.CompilerParams(
            dimension_semantics=("parallel",),
            vmem_limit_bytes=64 * 1024 * 1024,   # v5e scoped default is 16 MiB
        ),
    )(sgrid, xf, w_gmaj)

    return out.reshape(*lead, out_features)


def rbf_linear_reference(x, grid, spline_weight, *, grid_min=-2.0, grid_max=2.0,
                         num_grids=8):
    """Pure-JAX f32 mirror of the PyTorch forward (gaussian_rbf)."""
    alpha = (grid_max - grid_min) / (num_grids - 1)
    d = x[..., None] - grid                                   # (..., in, G)
    basis = jnp.exp(-((d / alpha) ** 2))
    flat = basis.reshape(*x.shape[:-1], -1)                   # (..., in*G)
    return flat @ spline_weight


if __name__ == "__main__":
    key = jax.random.PRNGKey(0)
    k_w, k_x = jax.random.split(key)

    # Module hyper-parameters (small, consistent with RBFLinear.__init__).
    in_features = 32
    out_features = 64
    num_grids = 8
    grid_min, grid_max = -2.0, 2.0
    spline_weight_init_scale = 0.1
    batch = 16

    # Deterministic parameter init (torch.linspace / torch.randn * scale analog).
    grid = jnp.linspace(grid_min, grid_max, num_grids, dtype=jnp.float32)
    spline_weight = (
        jax.random.normal(k_w, (in_features * num_grids, out_features), jnp.float32)
        * spline_weight_init_scale
    )
    x = jax.random.normal(k_x, (batch, in_features), dtype=jnp.float32)

    # Hoisted preprocessing: done once per weight update, not per forward.
    sgrid, w_gmaj = prepare_rbf_linear_params(
        grid, spline_weight,
        in_features=in_features, out_features=out_features,
        num_grids=num_grids, grid_min=grid_min, grid_max=grid_max,
    )

    out = rbf_linear_forward(
        x, sgrid, w_gmaj,
        num_grids=num_grids, grid_min=grid_min, grid_max=grid_max,
    )
    out = jax.block_until_ready(out)

    ref = rbf_linear_reference(
        x, grid, spline_weight,
        grid_min=grid_min, grid_max=grid_max, num_grids=num_grids,
    )

    assert out.shape == (batch, out_features), out.shape
    # bf16 matmul operands everywhere; on v6e/v7x the basis chain is also bf16,
    # so the tolerance covers ~2^-8 relative error amplified over K = G*IN = 256.
    assert jnp.allclose(out, ref, atol=5e-2, rtol=5e-2), (
        float(jnp.max(jnp.abs(out - ref)))
    )
    print("KERNEL_OK")
</pallas_src>

<mosaic_0001>
module attributes {stable_mosaic.version = 11 : i64} {
  func.func @_rbf_linear_kernel(%arg0: i32, %arg1: memref<1x256xbf16, #tpu.memory_space<vmem>>, %arg2: memref<8x32xf32, #tpu.memory_space<vmem>>, %arg3: memref<256x64xbf16, #tpu.memory_space<vmem>>, %arg4: memref<8x64xf32, #tpu.memory_space<vmem>>) attributes {dimension_semantics = [#tpu.dimension_semantics<parallel>], iteration_bounds = array<i64: 2>, scalar_prefetch = 0 : i64, scratch_operands = 0 : i64, tpu.core_type = #tpu.core_type<tc>, window_params = [{pipeline_mode = #tpu.pipeline_mode<synchronous>, transform_indices = @transform_0, window_bounds = array<i64: 1, 256>}, {transform_indices = @transform_1, window_bounds = array<i64: 8, 32>}, {pipeline_mode = #tpu.pipeline_mode<synchronous>, transform_indices = @transform_2, window_bounds = array<i64: 256, 64>}, {transform_indices = @transform_3, window_bounds = array<i64: 8, 64>}]} {
    %c0 = arith.constant 0 : index
    %c0_0 = arith.constant 0 : index
    %0 = vector.load %arg2[%c0, %c0_0] : memref<8x32xf32, #tpu.memory_space<vmem>>, vector<8x32xf32>
    %1 = arith.truncf %0 : vector<8x32xf32> to vector<8x32xbf16>
    %cst = arith.constant 1.750000e+00 : bf16
    %2 = vector.broadcast %cst : bf16 to vector<8x32xbf16>
    %3 = arith.mulf %1, %2 : vector<8x32xbf16>
    %4 = tpu.concatenate %3, %3, %3, %3, %3, %3, %3, %3 in 1 : vector<8x32xbf16>, vector<8x32xbf16>, vector<8x32xbf16>, vector<8x32xbf16>, vector<8x32xbf16>, vector<8x32xbf16>, vector<8x32xbf16>, vector<8x32xbf16> -> vector<8x256xbf16>
    %c0_1 = arith.constant 0 : index
    %c0_2 = arith.constant 0 : index
    %5 = vector.load %arg1[%c0_1, %c0_2] : memref<1x256xbf16, #tpu.memory_space<vmem>>, vector<1x256xbf16>
    %6 = vector.broadcast %5 : vector<1x256xbf16> to vector<8x256xbf16>
    %7 = arith.subf %4, %6 : vector<8x256xbf16>
    %8 = arith.mulf %7, %7 : vector<8x256xbf16>
    %cst_3 = arith.constant 0.000000e+00 : bf16
    %9 = vector.broadcast %cst_3 : bf16 to vector<8x256xbf16>
    %10 = arith.subf %9, %8 : vector<8x256xbf16>
    %11 = math.exp %10 : vector<8x256xbf16>
    %c0_4 = arith.constant 0 : index
    %c0_5 = arith.constant 0 : index
    %12 = vector.load %arg3[%c0_4, %c0_5] : memref<256x64xbf16, #tpu.memory_space<vmem>>, vector<256x64xbf16>
    %cst_6 = arith.constant dense<0.000000e+00> : vector<8x64xf32>
    %13 = tpu.matmul %11, %12, %cst_6 {dimension_numbers = #tpu.dot_dimension_numbers<[1], [0], [0], [1], [0, 0, 1, 1], [], []>} : vector<8x256xbf16>, vector<256x64xbf16>, vector<8x64xf32> -> vector<8x64xf32>
    %c0_7 = arith.constant 0 : index
    %c0_8 = arith.constant 0 : index
    %14 = vector.load %arg4[%c0_7, %c0_8] : memref<8x64xf32, #tpu.memory_space<vmem>>, vector<8x64xf32>
    tpu.vector_store %arg4[%c0_7, %c0_8], %13 {strides = array<i32>} : memref<8x64xf32, #tpu.memory_space<vmem>>, vector<8x64xf32>,
    return
  }
  func.func @transform_0(%arg0: i32) -> (i32, i32) {
    %c0_i32 = arith.constant 0 : i32
    %c0_i32_0 = arith.constant 0 : i32
    %c0_i32_1 = arith.constant 0 : i32
    return %c0_i32, %c0_i32_0 : i32, i32
  }
  func.func @transform_1(%arg0: i32) -> (i32, i32) {
    %c0_i32 = arith.constant 0 : i32
    %c0_i32_0 = arith.constant 0 : i32
    return %arg0, %c0_i32 : i32, i32
  }
  func.func @transform_2(%arg0: i32) -> (i32, i32) {
    %c0_i32 = arith.constant 0 : i32
    %c0_i32_0 = arith.constant 0 : i32
    %c0_i32_1 = arith.constant 0 : i32
    return %c0_i32, %c0_i32_0 : i32, i32
  }
  func.func @transform_3(%arg0: i32) -> (i32, i32) {
    %c0_i32 = arith.constant 0 : i32
    %c0_i32_0 = arith.constant 0 : i32
    return %arg0, %c0_i32 : i32, i32
  }
}

</mosaic_0001>

<llo_original>
// kernel: tpu_custom_call.1
$region0: #{tpu_custom_call.1}
  #allocation0 [shape = 'u32[]', space=smem, size = 0x4, offset = 0x4, fixed_abs, tag = 'smem constant byte address 0x4 - core index']
  #allocation1 [shape = 'u32[144,128]{1,0:T(1,128)}', space=vmem, size = 0x12000, scoped, tag = 'internal scratch']
  %s0 = inlined_call_operand.hbm [shape: bf16[1,256], index: 0, kind: input, shape index: {}]
  %s1 = inlined_call_operand.hbm [shape: f32[16,32], index: 1, kind: input, shape index: {}]
  %s2 = inlined_call_operand.hbm [shape: bf16[256,64], index: 2, kind: input, shape index: {}]
  %s3 = inlined_call_operand.hbm [shape: f32[16,64], index: 3, kind: output, shape index: {}]
  %s4 = sld [smem:[#allocation0]]
  $region57: #{tpu_custom_call.1} parent=0
    _
  %s6 = ssub.s32 1, %s4
  %s7 = scalar_select 0, %s6, %s4
  $region1: #{tpu_custom_call.1} parent=0
    #allocation2 [shape = 'u8[1024]{0}', space=vmem, size = 0x400, scoped, tag = 'input window, operand 0, single buffered']
    #allocation3 [shape = 's32[2]{0}', space=sflag, size = 0x8, scoped, tag = 'scoped memory for tpu_custom_call.1']
    #allocation4 [shape = 's32[2]{0}', space=sflag, size = 0x8, scoped, tag = 'scoped memory for tpu_custom_call.1']
    #allocation5 [shape = 'u8[8192]{0}', space=vmem, size = 0x2000, scoped, tag = 'input window, operand 1']
    #allocation6 [shape = 's32[2]{0}', space=sflag, size = 0x8, scoped, tag = 'scoped memory for tpu_custom_call.1']
    #allocation7 [shape = 'u8[65536]{0}', space=vmem, size = 0x10000, scoped, tag = 'input window, operand 2, single buffered']
    #allocation8 [shape = 'u8[8192]{0}', space=vmem, size = 0x2000, scoped, tag = 'output window, operand 0']
    %8 = vsyncpa [#allocation3], 0
    %9 = vsyncpa [#allocation6], 0
    %s10 = scalar_lea.sflag [#allocation6], 1
    %11 = vsyncpa %s10, 0
    %12 = vsyncpa [#allocation4], 0
    %s13 = scalar_lea.sflag [#allocation4], 1
    %14 = vsyncpa %s13, 0
    loop: start=0, step=1, limit=4
    $region2: #{tpu_custom_call.1} parent=1 // loop_pre_header
      _
    $region3: #{tpu_custom_call.1} parent=1 // loop_header
      %s16 = sphi 0, %s20
      %p17 = scmp.ge.s32.totalorder %s16, 4
      %s24 = sphi 0, %s24
      %s26 = sphi 0, %s24
      %s27 = sphi 0, %s26
      %s41 = sphi 0, %s27
      %s47 = sphi 0, %s49
      %s50 = sphi 0, %s47
      %s51 = sphi 0, %s50
      %s67 = sphi 0, %s51
      %s71 = sphi 0, %s71
      %s73 = sphi 0, %s71
      %s74 = sphi 0, %s73
      %s88 = sphi 0, %s74
      %s94 = sphi 0, %s96
      %s97 = sphi 0, %s94
      %s98 = sphi 0, %s97
      %s114 = sphi 0, %s98
    $region4: #{tpu_custom_call.1} parent=1 // loop_header_branch
      %19 = sbr.rel (%p17) target = $region8
    $region5: #{tpu_custom_call.1} parent=1 // loop_body
      %s21 = ssub.s32 %s16, 1
      %s22 = ssub.s32 %s16, 2
      %s23 = sadd.s32 %s16, 1
      %s25 = sadd.s32 %s24, 1
      %p28 = scmp.eq.s32.totalorder %s16, 1
      %p29 = scmp.ne.s32.totalorder %s24, %s26
      %p30 = scmp.eq.s32.totalorder %s16, 0
      %p31 = por %p29, %p30
      %p32 = scmp.ne.s32.totalorder %s24, %s26
      %p33 = scmp.eq.s32.totalorder %s21, 1
      %p34 = por %p32, %p33
      %p35 = scmp.ne.s32.totalorder %s26, %s27
      %p36 = scmp.eq.s32.totalorder %s21, 0
      %p37 = por %p35, %p36
      %p38 = scmp.ne.s32.totalorder %s26, %s27
      %p39 = scmp.eq.s32.totalorder %s22, 1
      %p40 = por %p38, %p39
      %p42 = scmp.ne.s32.totalorder %s27, %s41
      %p43 = scmp.eq.s32.totalorder %s22, 0
      %p44 = por %p42, %p43
      %s45 = ssub.s32 %s16, %s23
      %p46 = scmp.eq.s32.totalorder %s45, 0
      %s48 = sadd.s32 %s47, 1
      %s49 = scalar_select %p46, %s47, %s48
      %p52 = pneg %p46
      %p53 = scmp.eq.s32.totalorder %s16, 1
      %p54 = por %p52, %p53
      %p55 = scmp.ne.s32.totalorder %s47, %s50
      %p56 = scmp.eq.s32.totalorder %s16, 0
      %p57 = por %p55, %p56
      %p58 = scmp.ne.s32.totalorder %s47, %s50
      %p59 = scmp.eq.s32.totalorder %s21, 1
      %p60 = por %p58, %p59
      %p61 = scmp.ne.s32.totalorder %s50, %s51
      %p62 = scmp.eq.s32.totalorder %s21, 0
      %p63 = por %p61, %p62
      %p64 = scmp.ne.s32.totalorder %s50, %s51
      %p65 = scmp.eq.s32.totalorder %s22, 1
      %p66 = por %p64, %p65
      %p68 = scmp.ne.s32.totalorder %s51, %s67
      %p69 = scmp.eq.s32.totalorder %s22, 0
      %p70 = por %p68, %p69
      %s72 = sadd.s32 %s71, 1
      %p75 = scmp.eq.s32.totalorder %s16, 1
      %p76 = scmp.ne.s32.totalorder %s71, %s73
      %p77 = scmp.eq.s32.totalorder %s16, 0
      %p78 = por %p76, %p77
      %p79 = scmp.ne.s32.totalorder %s71, %s73
      %p80 = scmp.eq.s32.totalorder %s21, 1
      %p81 = por %p79, %p80
      %p82 = scmp.ne.s32.totalorder %s73, %s74
      %p83 = scmp.eq.s32.totalorder %s21, 0
      %p84 = por %p82, %p83
      %p85 = scmp.ne.s32.totalorder %s73, %s74
      %p86 = scmp.eq.s32.totalorder %s22, 1
      %p87 = por %p85, %p86
      %p89 = scmp.ne.s32.totalorder %s74, %s88
      %p90 = scmp.eq.s32.totalorder %s22, 0
      %p91 = por %p89, %p90
      %s92 = ssub.s32 %s16, %s23
      %p93 = scmp.eq.s32.totalorder %s92, 0
      %s95 = sadd.s32 %s94, 1
      %s96 = scalar_select %p93, %s94, %s95
      %p99 = pneg %p93
      %p100 = scmp.eq.s32.totalorder %s16, 1
      %p101 = por %p99, %p100
      %p102 = scmp.ne.s32.totalorder %s94, %s97
      %p103 = scmp.eq.s32.totalorder %s16, 0
      %p104 = por %p102, %p103
      %p105 = scmp.ne.s32.totalorder %s94, %s97
      %p106 = scmp.eq.s32.totalorder %s21, 1
      %p107 = por %p105, %p106
      %p108 = scmp.ne.s32.totalorder %s97, %s98
      %p109 = scmp.eq.s32.totalorder %s21, 0
      %p110 = por %p108, %p109
      %p111 = scmp.ne.s32.totalorder %s97, %s98
      %p112 = scmp.eq.s32.totalorder %s22, 1
      %p113 = por %p111, %p112
      %p115 = scmp.ne.s32.totalorder %s98, %s114
      %p116 = scmp.eq.s32.totalorder %s22, 0
      %p117 = por %p115, %p116
      %p118 = scmp.le.s32.totalorder 1, %s16
      %p119 = scmp.lt.s32.totalorder %s16, 3
      %p120 = pnand %p118, %p119
      %p121 = pneg %p120
      // Predicated region
      $region9: #{tpu_custom_call.1} parent=5 // pred_check
        _
      $region10: #{tpu_custom_call.1} parent=5 // pred_check_branch
        %123 = sbr.rel (%p120) target = $region12
      $region11: #{tpu_custom_call.1} parent=5 // pred_region
        %s124 = ssub.s32 %s16, 1
        // Predicated region
        $region13: #{tpu_custom_call.1} parent=11 // pred_check
          %p125 = pneg %p37
        $region14: #{tpu_custom_call.1} parent=11 // pred_check_branch
          %127 = sbr.rel (%p125) target = $region16
        $region15: #{tpu_custom_call.1} parent=11 // pred_region
          %s129 = ssub.s32 32, 32
          %130 = vsyncadd [#allocation3], %s129
          %s132 = sshll.u32 [#allocation2], 4
          %s133 = int_to_ptr.vmem [resolvable:$true] %s132
          %135 = dma.hbm_to_vmem [thread:$0]  %s0, 32, %s133, [#allocation3]
        $region16: #{tpu_custom_call.1} parent=11 // pred_fallthru
          _
        // Predicated region
        $region17: #{tpu_custom_call.1} parent=11 // pred_check
          %p136 = pneg %p84
        $region18: #{tpu_custom_call.1} parent=11 // pred_check_branch
          %138 = sbr.rel (%p136) target = $region20
        $region19: #{tpu_custom_call.1} parent=11 // pred_region
          %s140 = ssub.s32 2048, 2048
          %141 = vsyncadd [#allocation6], %s140
          %s142 = sshll.u32 [#allocation7], 4
          %s143 = int_to_ptr.vmem [resolvable:$true] %s142
          %148 = dma.hbm_to_vmem [thread:$0]  %s2, 2048, %s143, [#allocation6], 64, 64, 4
        $region20: #{tpu_custom_call.1} parent=11 // pred_fallthru
          _
      $region12: #{tpu_custom_call.1} parent=5 // pred_fallthru
        _
      %p149 = scmp.lt.s32.totalorder %s16, 2
      // Predicated region
      $region21: #{tpu_custom_call.1} parent=5 // pred_check
        %p150 = pneg %p149
      $region22: #{tpu_custom_call.1} parent=5 // pred_check_branch
        %152 = sbr.rel (%p150) target = $region24
      $region23: #{tpu_custom_call.1} parent=5 // pred_region
        // Predicated region
        $region25: #{tpu_custom_call.1} parent=23 // pred_check
          %p153 = pneg %p57
        $region26: #{tpu_custom_call.1} parent=23 // pred_check_branch
          %155 = sbr.rel (%p153) target = $region28
        $region27: #{tpu_custom_call.1} parent=23 // pred_region
          %s156 = sand.u32 %s16, 1
          %s157 = scalar_lea.sflag [#allocation6], %s156
          %s158 = sand.u32 %s47, 1
          %s159 = smul.addr %s158, 8
          %s160 = scalar_lea.vmem [#allocation5], %s159
          %s162 = ssub.s32 128, 128
          %163 = vsyncadd %s157, %s162
          %s164 = smul.addr %s16, 128
          %s165 = scalar_lea.hbm %s1, %s164
          %s167 = sshll.u32 %s160, 4
          %s168 = int_to_ptr.vmem [resolvable:$true] %s167
          %170 = dma.hbm_to_vmem [thread:$0]  %s165, 128, %s168, %s157
        $region28: #{tpu_custom_call.1} parent=23 // pred_fallthru
          _
      $region24: #{tpu_custom_call.1} parent=5 // pred_fallthru
        _
      %p171 = scmp.le.s32.totalorder 1, %s16
      %p172 = scmp.lt.s32.totalorder %s16, 3
      %p173 = pnand %p171, %p172
      %p174 = pneg %p173
      // Predicated region
      $region29: #{tpu_custom_call.1} parent=5 // pred_check
        _
      $region30: #{tpu_custom_call.1} parent=5 // pred_check_branch
        %176 = sbr.rel (%p173) target = $region32
      $region31: #{tpu_custom_call.1} parent=5 // pred_region
        %s177 = ssub.s32 %s16, 1
        // Predicated region
        $region33: #{tpu_custom_call.1} parent=31 // pred_check
          %p178 = pneg %p37
        $region34: #{tpu_custom_call.1} parent=31 // pred_check_branch
          %180 = sbr.rel (%p178) target = $region36
        $region35: #{tpu_custom_call.1} parent=31 // pred_region
          %181 = dma.done [#allocation3], 32
        $region36: #{tpu_custom_call.1} parent=31 // pred_fallthru
          _
        %s182 = sand.u32 %s21, 1
        %s183 = scalar_lea.sflag [#allocation6], %s182
        %s184 = sand.u32 %s50, 1
        %s185 = smul.addr %s184, 8
        %s186 = scalar_lea.vmem [#allocation5], %s185
        // Predicated region
        $region37: #{tpu_custom_call.1} parent=31 // pred_check
          %p187 = pneg %p63
        $region38: #{tpu_custom_call.1} parent=31 // pred_check_branch
          %189 = sbr.rel (%p187) target = $region40
        $region39: #{tpu_custom_call.1} parent=31 // pred_region
          %190 = dma.done %s183, 128
        $region40: #{tpu_custom_call.1} parent=31 // pred_fallthru
          _
        // Predicated region
        $region41: #{tpu_custom_call.1} parent=31 // pred_check
          %p191 = pneg %p84
        $region42: #{tpu_custom_call.1} parent=31 // pred_check_branch
          %193 = sbr.rel (%p191) target = $region44
        $region43: #{tpu_custom_call.1} parent=31 // pred_region
          %194 = dma.done [#allocation6], 2048
        $region44: #{tpu_custom_call.1} parent=31 // pred_fallthru
          _
        %p195 = pneg %p37
        %p196 = pneg %p34
        %s197 = sand.u32 %s21, 1
        %s198 = scalar_lea.sflag [#allocation6], %s197
        %s199 = sand.u32 %s50, 1
        %s200 = smul.addr %s199, 8
        %s201 = scalar_lea.vmem [#allocation5], %s200
        %p202 = pneg %p63
        %p203 = pneg %p60
        %p204 = pneg %p84
        %p205 = pneg %p81
        %p206 = pneg %p110
        %p207 = pneg %p107
        %s208 = sand.u32 %s97, 1
        %s209 = scalar_lea.sflag [#allocation4], %s208
        %s210 = sand.u32 %s97, 1
        %s211 = smul.addr %s210, 8
        %s212 = scalar_lea.vmem [#allocation8], %s211
        %v215 = vld [vmem:[%s186] sm:$0xff]
        %v216 = vpack.c.bf16 %v215, %v215
        %v217 = vmul.bf16 %v216, 1071661024
        %219 = vrot.lane.b32.xlu0 %v217, 32
        %v220 = vpop.permute.xlu0 %219
        %221 = vrot.lane.b32.xlu0 %v217, 64
        %v222 = vpop.permute.xlu0 %221
        %223 = vrot.lane.b32.xlu0 %v217, 96
        %v224 = vpop.permute.xlu0 %223
        %vm225 = vcmask 261120
        %v228 = vsel %vm225, %v217, %v220
        %vm229 = vcmask 523264
        %v231 = vsel %vm229, %v228, %v222
        %vm232 = vcmask 785408
        %v234 = vsel %vm232, %v231, %v224
        %v236 = vld [vmem:[#allocation2] sm:$0x3]
        %v239 = vunpack.c.l.s4 1966171168
        %v240 = vunpack.c.0.s8 %v239
        %v241 = vlaneseq
        %v242 = vshrl.u32 %v241, 7
        %v243 = vsub.s32 %v240, %v242
        %v244 = vrot.slane %v236, %v243
        %v245 = vcombine.high %v244, %v244
        %v247 = vunpack.c.l.s4 1966171168
        %v248 = vunpack.c.0.s8 %v247
        %v249 = vlaneseq
        %v250 = vshrl.u32 %v249, 7
        %v251 = vsub.s32 %v248, %v250
        %v252 = vrot.slane %v244, %v251
        %v254 = vunpack.c.l.s4 1966171168
        %v255 = vunpack.c.0.s8 %v254
        %v256 = vlaneseq
        %v257 = vshrl.u32 %v256, 7
        %v258 = vsub.s32 %v255, %v257
        %v259 = vrot.slane %v245, %v258
        %v261 = vpack.i.b16 %v252, %v252
        %v263 = vlaneseq
        %v264 = vshrl.u32 %v263, 7
        %v265 = vsub.s32 0, %v264
        %v266 = vrot.slane %v261, %v265
        %v268 = vpack.i.b16 %v259, %v259
        %v270 = vlaneseq
        %v271 = vshrl.u32 %v270, 7
        %v272 = vsub.s32 0, %v271
        %v273 = vrot.slane %v268, %v272
        %v274 = vsub.bf16 %v234, %v266
        %v275 = vsub.bf16 %v234, %v273
        %v276 = vmul.bf16 %v274, %v274
        %v277 = vmul.bf16 %v275, %v275
        %v278 = vsub.bf16 0, %v276
        %v279 = vsub.bf16 0, %v277
        %v281 = vmul.bf16 %v278, 1069105081
        %v282 = vpow.bf16.pop %v281
        %v284 = vmul.bf16 %v279, 1069105081
        %v285 = vpow.bf16.pop %v284
        %v286 = vld [vmem:[#allocation7] sm:$0xf]
        %v287 = vld [vmem:[#allocation7 + $0x4] sm:$0xf]
        %v288 = vld [vmem:[#allocation7 + $0x8] sm:$0xf]
        %v289 = vld [vmem:[#allocation7 + $0xc] sm:$0xf]
        %v290 = vld [vmem:[#allocation7 + $0x10] sm:$0xf]
        %v291 = vld [vmem:[#allocation7 + $0x14] sm:$0xf]
        %v292 = vld [vmem:[#allocation7 + $0x18] sm:$0xf]
        %v293 = vld [vmem:[#allocation7 + $0x1c] sm:$0xf]
        %v294 = vld [vmem:[#allocation7 + $0x20] sm:$0xf]
        %v295 = vld [vmem:[#allocation7 + $0x24] sm:$0xf]
        %v296 = vld [vmem:[#allocation7 + $0x28] sm:$0xf]
        %v297 = vld [vmem:[#allocation7 + $0x2c] sm:$0xf]
        %v298 = vld [vmem:[#allocation7 + $0x30] sm:$0xf]
        %v299 = vld [vmem:[#allocation7 + $0x34] sm:$0xf]
        %v300 = vld [vmem:[#allocation7 + $0x38] sm:$0xf]
        %v301 = vld [vmem:[#allocation7 + $0x3c] sm:$0xf]
        %v302 = vld [vmem:[#allocation7 + $0x40] sm:$0xf]
        %v303 = vld [vmem:[#allocation7 + $0x44] sm:$0xf]
        %v304 = vld [vmem:[#allocation7 + $0x48] sm:$0xf]
        %v305 = vld [vmem:[#allocation7 + $0x4c] sm:$0xf]
        %v306 = vld [vmem:[#allocation7 + $0x50] sm:$0xf]
        %v307 = vld [vmem:[#allocation7 + $0x54] sm:$0xf]
        %v308 = vld [vmem:[#allocation7 + $0x58] sm:$0xf]
        %v309 = vld [vmem:[#allocation7 + $0x5c] sm:$0xf]
        %v310 = vld [vmem:[#allocation7 + $0x60] sm:$0xf]
        %v311 = vld [vmem:[#allocation7 + $0x64] sm:$0xf]
        %v312 = vld [vmem:[#allocation7 + $0x68] sm:$0xf]
        %v313 = vld [vmem:[#allocation7 + $0x6c] sm:$0xf]
        %v314 = vld [vmem:[#allocation7 + $0x70] sm:$0xf]
        %v315 = vld [vmem:[#allocation7 + $0x74] sm:$0xf]
        %v316 = vld [vmem:[#allocation7 + $0x78] sm:$0xf]
        %v317 = vld [vmem:[#allocation7 + $0x7c] sm:$0xf]
        %v350 = vunpack.c.l.b16 %v286
        %v351 = vunpack.c.l.b16 %v287
        %v352 = vunpack.c.l.b16 %v288
        %v353 = vunpack.c.l.b16 %v289
        %v354 = vunpack.c.l.b16 %v290
        %v355 = vunpack.c.l.b16 %v291
        %v356 = vunpack.c.l.b16 %v292
        %v357 = vunpack.c.l.b16 %v293
        %v358 = vunpack.c.l.b16 %v294
        %v359 = vunpack.c.l.b16 %v295
        %v360 = vunpack.c.l.b16 %v296
        %v361 = vunpack.c.l.b16 %v297
        %v362 = vunpack.c.l.b16 %v298
        %v363 = vunpack.c.l.b16 %v299
        %v364 = vunpack.c.l.b16 %v300
        %v365 = vunpack.c.l.b16 %v301
        %v366 = vunpack.c.l.b16 %v302
        %v367 = vunpack.c.l.b16 %v303
        %v368 = vunpack.c.l.b16 %v304
        %v369 = vunpack.c.l.b16 %v305
        %v370 = vunpack.c.l.b16 %v306
        %v371 = vunpack.c.l.b16 %v307
        %v372 = vunpack.c.l.b16 %v308
        %v373 = vunpack.c.l.b16 %v309
        %v374 = vunpack.c.l.b16 %v310
        %v375 = vunpack.c.l.b16 %v311
        %v376 = vunpack.c.l.b16 %v312
        %v377 = vunpack.c.l.b16 %v313
        %v378 = vunpack.c.l.b16 %v314
        %v379 = vunpack.c.l.b16 %v315
        %v380 = vunpack.c.l.b16 %v316
        %v381 = vunpack.c.l.b16 %v317
        %v382 = vpack.c.b16 %v351, %v350
        %v383 = vpack.c.b16 %v353, %v352
        %v384 = vpack.c.b16 %v355, %v354
        %v385 = vpack.c.b16 %v357, %v356
        %v386 = vpack.c.b16 %v359, %v358
        %v387 = vpack.c.b16 %v361, %v360
        %v388 = vpack.c.b16 %v363, %v362
        %v389 = vpack.c.b16 %v365, %v364
        %v390 = vpack.c.b16 %v367, %v366
        %v391 = vpack.c.b16 %v369, %v368
        %v392 = vpack.c.b16 %v371, %v370
        %v393 = vpack.c.b16 %v373, %v372
        %v394 = vpack.c.b16 %v375, %v374
        %v395 = vpack.c.b16 %v377, %v376
        %v396 = vpack.c.b16 %v379, %v378
        %v397 = vpack.c.b16 %v381, %v380
        %414 = vmatprep.subr.bf16.mxu0 0
        %415 = vmatpush1.bf16.msra.mxu0 %v382
        %416 = vmatprep.subr.bf16.mxu0 0
        %417 = vmatpush1.bf16.msra.mxu0 %v383
        %418 = vmatprep.subr.bf16.mxu0 0
        %419 = vmatpush1.bf16.msra.mxu0 %v384
        %420 = vmatprep.subr.bf16.mxu0 0
        %421 = vmatpush1.bf16.msra.mxu0 %v385
        %422 = vmatprep.subr.bf16.mxu0 0
        %423 = vmatpush1.bf16.msra.mxu0 %v386
        %424 = vmatprep.subr.bf16.mxu0 0
        %425 = vmatpush1.bf16.msra.mxu0 %v387
        %426 = vmatprep.subr.bf16.mxu0 0
        %427 = vmatpush1.bf16.msra.mxu0 %v388
        %428 = vmatprep.subr.bf16.mxu0 0
        %429 = vmatpush1.bf16.msra.mxu0 %v389
        %430 = vmatprep.subr.bf16.mxu0 0
        %431 = vmatpush1.bf16.msra.mxu0 %v390
        %432 = vmatprep.subr.bf16.mxu0 0
        %433 = vmatpush1.bf16.msra.mxu0 %v391
        %434 = vmatprep.subr.bf16.mxu0 0
        %435 = vmatpush1.bf16.msra.mxu0 %v392
        %436 = vmatprep.subr.bf16.mxu0 0
        %437 = vmatpush1.bf16.msra.mxu0 %v393
        %438 = vmatprep.subr.bf16.mxu0 0
        %439 = vmatpush1.bf16.msra.mxu0 %v394
        %440 = vmatprep.subr.bf16.mxu0 0
        %441 = vmatpush1.bf16.msra.mxu0 %v395
        %442 = vmatprep.subr.bf16.mxu0 0
        %443 = vmatpush1.bf16.msra.mxu0 %v396
        %444 = vmatprep.subr.bf16.mxu0 0
        %445 = vmatpush1.bf16.msra.mxu0 %v397
        %446 = vmatprep.mubr.bf16.mxu0 %v285
        %447 = vmatmul.mubr.bf16.gmra.mrb[0].mxu0 %v282
        %v448 = vpop.f32.mrb[0].mxu0
        %v449 = vadd.f32 0.0, %v448
        %v450 = vpop.f32.mrb[0].mxu0
        %v451 = vpop.f32.mrb[0].mxu0
        %v452 = vpop.f32.mrb[0].mxu0
        %453 = vdwg.mxu0
        %454 = vst.msk [vmem:[%s212] sm:$0xff] %vm229, %v449
        %s455 = sand.u32 %s97, 1
        %s456 = scalar_lea.sflag [#allocation4], %s455
        %s457 = sand.u32 %s97, 1
        %s458 = smul.addr %s457, 8
        %s459 = scalar_lea.vmem [#allocation8], %s458
        // Predicated region
        $region45: #{tpu_custom_call.1} parent=31 // pred_check
          %p460 = pneg %p107
        $region46: #{tpu_custom_call.1} parent=31 // pred_check_branch
          %462 = sbr.rel (%p460) target = $region48
        $region47: #{tpu_custom_call.1} parent=31 // pred_region
          %s464 = ssub.s32 128, 128
          %465 = vsyncadd %s456, %s464
          %s466 = smul.addr %s21, 128
          %s467 = scalar_lea.hbm %s3, %s466
          %s469 = sshll.u32 %s459, 4
          %s470 = int_to_ptr.vmem [resolvable:$true] %s469
          %472 = dma.vmem_to_hbm [thread:$0]  %s470, 128, %s467, %s456
        $region48: #{tpu_custom_call.1} parent=31 // pred_fallthru
          _
      $region32: #{tpu_custom_call.1} parent=5 // pred_fallthru
        _
      %p473 = scmp.le.s32.totalorder 2, %s16
      // Predicated region
      $region49: #{tpu_custom_call.1} parent=5 // pred_check
        %p474 = pneg %p473
      $region50: #{tpu_custom_call.1} parent=5 // pred_check_branch
        %476 = sbr.rel (%p474) target = $region52
      $region51: #{tpu_custom_call.1} parent=5 // pred_region
        %s477 = ssub.s32 %s16, 2
        // Predicated region
        $region53: #{tpu_custom_call.1} parent=51 // pred_check
          %p478 = pneg %p113
        $region54: #{tpu_custom_call.1} parent=51 // pred_check_branch
          %480 = sbr.rel (%p478) target = $region56
        $region55: #{tpu_custom_call.1} parent=51 // pred_region
          %s481 = sand.u32 %s98, 1
          %s482 = scalar_lea.sflag [#allocation4], %s481
          %s483 = sand.u32 %s98, 1
          %s484 = smul.addr %s483, 8
          %s485 = scalar_lea.vmem [#allocation8], %s484
          %486 = dma.done %s482, 128
        $region56: #{tpu_custom_call.1} parent=51 // pred_fallthru
          _
      $region52: #{tpu_custom_call.1} parent=5 // pred_fallthru
        _
    $region6: #{tpu_custom_call.1} parent=1 // loop_footer
      %s20 = sadd.s32 1, %s16
    $region7: #{tpu_custom_call.1} parent=1 // loop_footer_branch
      %15 = sbr.rel target = $region3
    $region8: #{tpu_custom_call.1} parent=1 // loop_exit
      _
    %487 = vsyncpa [#allocation3], 1
    %s488 = scalar_lea.sflag [#allocation3], 1
    %489 = vsyncpa %s488, 1
    %490 = vsyncpa [#allocation6], 1
    %s491 = scalar_lea.sflag [#allocation6], 1
    %492 = vsyncpa %s491, 1
    %493 = vsyncpa [#allocation4], 1
    %s494 = scalar_lea.sflag [#allocation4], 1
    %495 = vsyncpa %s494, 1

</llo_original>
